<compile_context>
chip_gen: v7x
topology: tpu7x:2x2x1
jax: 0.10.0
libtpu: 0.0.40
codegen_flags: <defaults>
</compile_context>

<pallas_src>
import jax
import jax.numpy as jnp
from jax.experimental import pallas as pl
from jax.experimental.pallas import tpu as pltpu

_LANE = 128
_MAX_COMPUTE_CHUNK = 512  # lanes per in-kernel sub-tile (vreg-pressure bound)


# ----------------------------------------------------------------------------
# Pallas kernel: per-row cross-entropy of a transposed (C, M_pad) logits slab.
#   out[0, r] = -log_softmax(logits[:, r])[target[r]]     (0 for target < 0)
# Rows live on the lane axis, classes on the sublane axis.
# ----------------------------------------------------------------------------
def _colwise_ce_kernel(logits_ref, tgt_ref, out_ref):
    tile = out_ref.shape[-1]                       # lanes in this DMA tile
    # largest multiple-of-128 divisor of `tile` that is <= _MAX_COMPUTE_CHUNK
    chunk = _LANE
    for c in (_MAX_COMPUTE_CHUNK, 384, 256, _LANE):
        if tile % c == 0:
            chunk = c
            break
    n_chunks = tile // chunk

    def body(j, carry):
        start = pl.multiple_of(j * chunk, _LANE)
        logits = logits_ref[:, pl.ds(start, chunk)].astype(jnp.float32)  # (C, CH)
        tgt = tgt_ref[:, pl.ds(start, chunk)]                            # (1, CH)

        # Numerically stable log-sum-exp over the class (sublane) axis.
        m = jnp.max(logits, axis=0, keepdims=True)                        # (1, CH)
        shifted = logits - m
        lse = jnp.log(jnp.sum(jnp.exp(shifted), axis=0, keepdims=True))   # (1, CH)

        # Select shifted[target] via iota compare (no gather, no full log_prob).
        cls_ids = jax.lax.broadcasted_iota(jnp.int32, logits.shape, 0)
        picked = jnp.sum(jnp.where(cls_ids == tgt, shifted, 0.0),
                         axis=0, keepdims=True)                           # (1, CH)

        # -log p[target] = lse - shifted[target]; rows with tgt < 0 -> 0.
        # TODO(synk): targets outside [0, C) (other than -1 padding) silently
        # contribute `lse` instead of erroring like torch.F.cross_entropy.
        out_ref[:, pl.ds(start, chunk)] = jnp.where(tgt >= 0,
                                                    lse - picked, 0.0)
        return carry

    jax.lax.fori_loop(0, n_chunks, body, 0, unroll=True)


def _pick_tiling(m_rows, max_tile=2048):
    """Pick a lane-tile size (multiple of 128) and the padded row count.

    Keeps the grid >= 2 steps when possible so v7x's two TensorCores can both
    be used via the "parallel" dimension semantic.
    """
    m128 = pl.cdiv(max(int(m_rows), 1), _LANE) * _LANE
    if m128 <= _LANE:
        return _LANE, _LANE
    if m128 <= max_tile:
        tile = max(_LANE, (m128 // 2) // _LANE * _LANE)
    else:
        tile = max_tile
    m_pad = pl.cdiv(m128, tile) * tile
    return tile, m_pad


def rowwise_ce_pallas(logit_chunks, target_chunks, num_classes,
                      max_row_tile=2048):
    """Per-row NLL for a list of (rows_i, C) logits chunks + (rows_i,) targets.

    Targets < 0 mark rows to be ignored (their loss is exactly 0).  The chunks
    (plus a zero/-1 pad chunk) are concatenated once, transposed once into the
    rows-in-lanes (C, M_pad) layout, and streamed through a single Pallas
    launch.  Returns the (M,) float32 per-row losses.
    """
    C = num_classes
    M = sum(int(c.shape[0]) for c in logit_chunks)
    tile, m_pad = _pick_tiling(M, max_row_tile)
    pad = m_pad - M

    dtype = logit_chunks[0].dtype
    logit_chunks = list(logit_chunks)
    target_chunks = [t.astype(jnp.int32) for t in target_chunks]
    if pad:
        # Pad inside the concat (no extra full-slab copy); zero logits keep
        # lse finite, target -1 marks the rows as invalid.
        logit_chunks.append(jnp.zeros((pad, C), dtype))
        target_chunks.append(jnp.full((pad,), -1, jnp.int32))

    # One concat + one transpose: rows-in-lanes / classes-in-sublanes layout.
    logits_t = jnp.concatenate(logit_chunks, axis=0).T          # (C, m_pad)
    tgt_2d = jnp.concatenate(target_chunks, axis=0)[None, :]    # (1, m_pad)

    row_loss = pl.pallas_call(
        _colwise_ce_kernel,
        out_shape=jax.ShapeDtypeStruct((1, m_pad), jnp.float32),
        grid_spec=pltpu.PrefetchScalarGridSpec(
            num_scalar_prefetch=0,
            grid=(m_pad // tile,),
            in_specs=[
                pl.BlockSpec((C, tile), lambda i: (0, i)),
                pl.BlockSpec((1, tile), lambda i: (0, i)),
            ],
            out_specs=pl.BlockSpec((1, tile), lambda i: (0, i)),
        ),
        compiler_params=pltpu.CompilerParams(
            dimension_semantics=("parallel",)),
    )(logits_t, tgt_2d)
    return row_loss[0, :M]


# ----------------------------------------------------------------------------
# ABILoss wrapper: static reshape/concat glue in JAX, one fused CE kernel.
# ----------------------------------------------------------------------------
class ABILoss:
    def __init__(self, enc_weight=1.0, dec_weight=1.0, fusion_weight=1.0,
                 num_classes=37, max_row_tile=2048):
        assert isinstance(enc_weight, (float, int))
        assert isinstance(dec_weight, (float, int))
        assert isinstance(fusion_weight, (float, int))
        self.enc_weight = float(enc_weight)
        self.dec_weight = float(dec_weight)
        self.fusion_weight = float(fusion_weight)
        self.num_classes = num_classes
        self.max_row_tile = max_row_tile

    def forward(self, outputs, targets_dict, img_metas=None):
        assert ('out_enc' in outputs or 'out_decs' in outputs
                or 'out_fusers' in outputs)

        targets = list(targets_dict['targets'])
        target_lens = [int(t.shape[0]) for t in targets]
        valid_per_iter = sum(target_lens)
        C = self.num_classes

        # Dense (N*T,) target row built once per distinct T: real target ids
        # for valid steps, -1 for the padded tail of each sample.
        padded_tgt_cache = {}

        def padded_flat_targets(T):
            if T not in padded_tgt_cache:
                rows = []
                for t, L in zip(targets, target_lens):
                    t = t.astype(jnp.int32)
                    if L < T:
                        t = jnp.concatenate(
                            [t, jnp.full((T - L,), -1, jnp.int32)])
                    rows.append(t)
                padded_tgt_cache[T] = jnp.concatenate(rows)     # (N*T,)
            return padded_tgt_cache[T]

        logit_chunks, tgt_chunks, bounds = [], [], []
        off = 0

        def add_segment(key, weight, logit_list):
            nonlocal off
            rows, valid = 0, 0
            for lg in logit_list:                 # each lg: (N, T, C)
                n, T, c = lg.shape
                assert c == C
                logit_chunks.append(lg.reshape(n * T, C))
                tgt_chunks.append(padded_flat_targets(T))
                rows += n * T
                valid += valid_per_iter
            bounds.append((key, weight, off, rows, valid))
            off += rows

        if outputs.get('out_enc', None):
            add_segment('loss_visual', self.enc_weight,
                        [outputs['out_enc']['logits']])
        if outputs.get('out_decs', None):
            add_segment('loss_lang', self.dec_weight,
                        [o['logits'] for o in outputs['out_decs']])
        if outputs.get('out_fusers', None):
            add_segment('loss_fusion', self.fusion_weight,
                        [o['logits'] for o in outputs['out_fusers']])

        # Single Pallas launch for every cross-entropy row of every segment.
        row_loss = rowwise_ce_pallas(logit_chunks, tgt_chunks, C,
                                     self.max_row_tile)

        # Per-segment means via static slices; padded (-1) rows are exactly 0,
        # and the denominators are exact Python ints.
        losses = {}
        for key, w, start, rows, valid in bounds:
            seg_mean = jnp.sum(row_loss[start:start + rows]) / float(max(valid, 1))
            losses[key] = seg_mean * w
        return losses

    __call__ = forward


# ----------------------------------------------------------------------------
# Pure-JAX reference for verification.
# ----------------------------------------------------------------------------
def _ce_ref(logits, targets, num_classes):
    logp = jax.nn.log_softmax(logits.astype(jnp.float32), axis=-1)
    oh = jax.nn.one_hot(targets, num_classes, dtype=jnp.float32)
    return jnp.mean(-jnp.sum(oh * logp, axis=-1))


if __name__ == "__main__":
    key = jax.random.PRNGKey(0)
    N, T, C = 2, 8, 37          # batch, max seq len, num_classes
    num_dec_iters, num_fuser_iters = 3, 2
    target_lens = [5, 7]        # variable-length targets per sample

    keys = jax.random.split(key, 3 + num_dec_iters + num_fuser_iters)
    targets = [
        jax.random.randint(keys[0], (target_lens[0],), 0, C, dtype=jnp.int32),
        jax.random.randint(keys[1], (target_lens[1],), 0, C, dtype=jnp.int32),
    ]
    enc_logits = jax.random.normal(keys[2], (N, T, C), jnp.float32)
    dec_logits = [jax.random.normal(keys[3 + i], (N, T, C), jnp.float32)
                  for i in range(num_dec_iters)]
    fus_logits = [jax.random.normal(keys[3 + num_dec_iters + i], (N, T, C),
                                    jnp.float32)
                  for i in range(num_fuser_iters)]

    outputs = {
        'out_enc': {'logits': enc_logits},
        'out_decs': [{'logits': l} for l in dec_logits],
        'out_fusers': [{'logits': l} for l in fus_logits],
    }
    targets_dict = {'targets': targets}

    loss_mod = ABILoss(enc_weight=1.0, dec_weight=1.0, fusion_weight=1.0,
                       num_classes=C)
    losses = loss_mod(outputs, targets_dict)
    losses = jax.tree_util.tree_map(jax.block_until_ready, losses)

    # Reference check (pure JAX, PyTorch-equivalent flatten) vs fused Pallas CE.
    flat_t = jnp.concatenate(targets)
    flat_enc = jnp.concatenate([enc_logits[i, :target_lens[i]]
                                for i in range(N)], axis=0)
    ref_visual = _ce_ref(flat_enc, flat_t, C)

    flat_dec = jnp.concatenate(
        [jnp.concatenate([l[i, :target_lens[i]] for i in range(N)], axis=0)
         for l in dec_logits], axis=0)
    ref_lang = _ce_ref(flat_dec, jnp.tile(flat_t, num_dec_iters), C)

    flat_fus = jnp.concatenate(
        [jnp.concatenate([l[i, :target_lens[i]] for i in range(N)], axis=0)
         for l in fus_logits], axis=0)
    ref_fusion = _ce_ref(flat_fus, jnp.tile(flat_t, num_fuser_iters), C)

    assert jnp.allclose(losses['loss_visual'], ref_visual, atol=1e-5)
    assert jnp.allclose(losses['loss_lang'], ref_lang, atol=1e-5)
    assert jnp.allclose(losses['loss_fusion'], ref_fusion, atol=1e-5)

    print("KERNEL_OK")
</pallas_src>

<mosaic_0001>
module attributes {stable_mosaic.version = 11 : i64} {
  func.func @_colwise_ce_kernel(%arg0: i32, %arg1: memref<37x128xf32, #tpu.memory_space<vmem>>, %arg2: memref<1x128xi32, #tpu.memory_space<vmem>>, %arg3: memref<1x128xf32, #tpu.memory_space<vmem>>) attributes {dimension_semantics = [#tpu.dimension_semantics<parallel>], iteration_bounds = array<i64: 1>, scalar_prefetch = 0 : i64, scratch_operands = 0 : i64, tpu.core_type = #tpu.core_type<tc>, window_params = [{transform_indices = @transform_0, window_bounds = array<i64: 37, 128>}, {transform_indices = @transform_1, window_bounds = array<i64: 1, 128>}, {transform_indices = @transform_2, window_bounds = array<i64: 1, 128>}]} {
    %c0_i32 = arith.constant 0 : i32
    %c128_i32 = arith.constant 128 : i32
    %0 = arith.muli %c0_i32, %c128_i32 : i32
    %1 = tpu.assume_multiple %0, 128 : i32
    %c0 = arith.constant 0 : index
    %2 = arith.index_cast %1 : i32 to index
    %3 = vector.load %arg1[%c0, %2] : memref<37x128xf32, #tpu.memory_space<vmem>>, vector<37x128xf32>
    %c0_0 = arith.constant 0 : index
    %4 = arith.index_cast %1 : i32 to index
    %5 = vector.load %arg2[%c0_0, %4] : memref<1x128xi32, #tpu.memory_space<vmem>>, vector<1x128xi32>
    %cst = arith.constant dense<0xFF800000> : vector<128xf32>
    %6 = vector.multi_reduction <maximumf>, %3, %cst [0] : vector<37x128xf32> to vector<128xf32>
    %7 = vector.shape_cast %6 : vector<128xf32> to vector<1x128xf32>
    %8 = vector.broadcast %7 : vector<1x128xf32> to vector<37x128xf32>
    %9 = arith.subf %3, %8 : vector<37x128xf32>
    %10 = math.exp %9 : vector<37x128xf32>
    %cst_1 = arith.constant dense<0.000000e+00> : vector<128xf32>
    %11 = vector.multi_reduction <add>, %10, %cst_1 [0] : vector<37x128xf32> to vector<128xf32>
    %12 = vector.shape_cast %11 : vector<128xf32> to vector<1x128xf32>
    %13 = math.log %12 : vector<1x128xf32>
    %14 = tpu.iota {dimensions = array<i32: 0>} : vector<37x128xi32>
    %15 = vector.broadcast %5 : vector<1x128xi32> to vector<37x128xi32>
    %16 = arith.cmpi eq, %14, %15 : vector<37x128xi32>
    %cst_2 = arith.constant 0.000000e+00 : f32
    %17 = vector.broadcast %cst_2 : f32 to vector<37x128xf32>
    %18 = arith.select %16, %9, %17 : vector<37x128xi1>, vector<37x128xf32>
    %cst_3 = arith.constant dense<0.000000e+00> : vector<128xf32>
    %19 = vector.multi_reduction <add>, %18, %cst_3 [0] : vector<37x128xf32> to vector<128xf32>
    %20 = vector.shape_cast %19 : vector<128xf32> to vector<1x128xf32>
    %c0_i32_4 = arith.constant 0 : i32
    %21 = vector.broadcast %c0_i32_4 : i32 to vector<1x128xi32>
    %22 = arith.cmpi sge, %5, %21 : vector<1x128xi32>
    %23 = arith.subf %13, %20 : vector<1x128xf32>
    %cst_5 = arith.constant 0.000000e+00 : f32
    %24 = vector.broadcast %cst_5 : f32 to vector<1x128xf32>
    %25 = arith.select %22, %23, %24 : vector<1x128xi1>, vector<1x128xf32>
    %c0_6 = arith.constant 0 : index
    %26 = arith.index_cast %1 : i32 to index
    %27 = vector.load %arg3[%c0_6, %26] : memref<1x128xf32, #tpu.memory_space<vmem>>, vector<1x128xf32>
    tpu.vector_store %arg3[%c0_6, %26], %25 {strides = array<i32>} : memref<1x128xf32, #tpu.memory_space<vmem>>, vector<1x128xf32>,
    %c1_i32 = arith.constant 1 : i32
    return
  }
  func.func @transform_0(%arg0: i32) -> (i32, i32) {
    %c0_i32 = arith.constant 0 : i32
    %c0_i32_0 = arith.constant 0 : i32
    return %c0_i32, %arg0 : i32, i32
  }
  func.func @transform_1(%arg0: i32) -> (i32, i32) {
    %c0_i32 = arith.constant 0 : i32
    %c0_i32_0 = arith.constant 0 : i32
    return %c0_i32, %arg0 : i32, i32
  }
  func.func @transform_2(%arg0: i32) -> (i32, i32) {
    %c0_i32 = arith.constant 0 : i32
    %c0_i32_0 = arith.constant 0 : i32
    return %c0_i32, %arg0 : i32, i32
  }
}

</mosaic_0001>

<llo_original>
// kernel: tpu_custom_call.1
$region0: #{tpu_custom_call.1}
  #allocation0 [shape = 'u32[]', space=smem, size = 0x4, offset = 0x4, fixed_abs, tag = 'smem constant byte address 0x4 - core index']
  #allocation1 [shape = 'u32[144,128]{1,0:T(1,128)}', space=vmem, size = 0x12000, scoped, tag = 'internal scratch']
  %s0 = inlined_call_operand.hbm [shape: f32[37,128], index: 0, kind: input, shape index: {}]
  %s1 = inlined_call_operand.vmem [shape: s32[1,128], index: 1, kind: input, shape index: {}]
  %s2 = inlined_call_operand.hbm [shape: f32[1,128], index: 2, kind: output, shape index: {}]
  %s3 = sld [smem:[#allocation0]]
  $region22: #{tpu_custom_call.1} parent=0
    _
  %s5 = ssub.s32 1, %s3
  %s6 = scalar_select 0, %s5, %s3
  $region1: #{tpu_custom_call.1} parent=0
    #allocation2 [shape = 'u8[20480]{0}', space=vmem, size = 0x5000, scoped, tag = 'input window, operand 0, single buffered']
    #allocation3 [shape = 's32[1]{0}', space=sflag, size = 0x4, scoped, tag = 'scoped memory for tpu_custom_call.1']
    #allocation4 [shape = 's32[1]{0}', space=sflag, size = 0x4, scoped, tag = 'scoped memory for tpu_custom_call.1']
    #allocation5 [shape = 'u8[512]{0}', space=vmem, size = 0x400, scoped, tag = 'output window, operand 0, single buffered']
    %7 = vsyncpa [#allocation3], 0
    %8 = vsyncpa [#allocation4], 0
    // Predicated region
    $region2: #{tpu_custom_call.1} parent=1 // pred_check
      _
    $region3: #{tpu_custom_call.1} parent=1 // pred_check_branch
      %10 = sbr.rel (0) target = $region5
    $region4: #{tpu_custom_call.1} parent=1 // pred_region
      %s12 = ssub.s32 640, 640
      %13 = vsyncadd [#allocation3], %s12
      %s14 = sshll.u32 [#allocation2], 4
      %s15 = int_to_ptr.vmem [resolvable:$true] %s14
      %20 = dma.hbm_to_vmem [thread:$0]  %s0, 640, %s15, [#allocation3], 128, 128, 8
    $region5: #{tpu_custom_call.1} parent=1 // pred_fallthru
      _
    // Predicated region
    $region6: #{tpu_custom_call.1} parent=1 // pred_check
      _
    $region7: #{tpu_custom_call.1} parent=1 // pred_check_branch
      %22 = sbr.rel (0) target = $region9
    $region8: #{tpu_custom_call.1} parent=1 // pred_region
      _
    $region9: #{tpu_custom_call.1} parent=1 // pred_fallthru
      _
    // Predicated region
    $region10: #{tpu_custom_call.1} parent=1 // pred_check
      _
    $region11: #{tpu_custom_call.1} parent=1 // pred_check_branch
      %24 = sbr.rel (0) target = $region13
    $region12: #{tpu_custom_call.1} parent=1 // pred_region
      %25 = dma.done [#allocation3], 640
    $region13: #{tpu_custom_call.1} parent=1 // pred_fallthru
      _
    %v26 = vld [vmem:[#allocation2] sm:$0xff]
    %v27 = vld [vmem:[#allocation2 + $0x8] sm:$0xff]
    %v28 = vld [vmem:[#allocation2 + $0x10] sm:$0xff]
    %v29 = vld [vmem:[#allocation2 + $0x18] sm:$0xff]
    %v30 = vld [vmem:[#allocation2 + $0x20] sm:$0x1f]
    %v31 = vld [vmem:[%s1] sm:$0x1]
    %vm32 = vcmask 1044480
    %v33 = vsel %vm32, %v30, -inf
    %v34 = vmax.f32 %v26, %v33
    %v35 = vmax.f32 %v34, %v27
    %v36 = vmax.f32 %v28, %v29
    %v37 = vmax.f32 %v35, %v36
    %v38 = vrot.slane %v37, 4
    %v39 = vmax.f32 %v37, %v38
    %v40 = vrot.slane %v39, 2
    %v41 = vmax.f32 %v39, %v40
    %v42 = vrot.slane %v41, 1
    %v43 = vmax.f32 %v41, %v42
    %v44 = vsub.f32 %v26, %v43
    %v45 = vsub.f32 %v27, %v43
    %v46 = vsub.f32 %v28, %v43
    %v47 = vsub.f32 %v29, %v43
    %v48 = vsub.f32 %v30, %v43
    %v49 = vmul.f32 %v44, 1.442695
    %v50 = vpow.pop %v49
    %v51 = vmul.f32 %v45, 1.442695
    %v52 = vpow.pop %v51
    %v53 = vmul.f32 %v46, 1.442695
    %v54 = vpow.pop %v53
    %v55 = vmul.f32 %v47, 1.442695
    %v56 = vpow.pop %v55
    %v57 = vmul.f32 %v48, 1.442695
    %v58 = vpow.pop %v57
    %v59 = vadd.f32 %v50, %v52
    %v60 = vadd.f32 %v59, %v54
    %v61 = vadd.f32 %v60, %v56
    %v62 = vsel %vm32, %v58, 0.0
    %v63 = vadd.f32 %v61, %v62
    %v64 = vrot.slane %v63, 4
    %v65 = vadd.f32 %v63, %v64
    %v66 = vrot.slane %v65, 2
    %v67 = vadd.f32 %v65, %v66
    %v68 = vrot.slane %v67, 1
    %v69 = vadd.f32 %v67, %v68
    %v70 = vlog2.pop %v69
    %v71 = vmul.f32 %v70, 0.6931472
    %v72 = vlaneseq
    %v73 = vshrl.u32 %v72, 7
    %v74 = vadd.s32 %v73, 8
    %v75 = vadd.s32 %v73, 16
    %v76 = vadd.s32 %v73, 24
    %v77 = vadd.s32 %v73, 32
    %v78 = vlaneseq
    %v79 = vshrl.u32 %v78, 7
    %v80 = vsub.s32 0, %v79
    %v81 = vrot.slane %v31, %v80
    %vm82 = vcmp.eq.s32.totalorder %v73, %v81
    %vm83 = vcmp.eq.s32.totalorder %v74, %v81
    %vm84 = vcmp.eq.s32.totalorder %v75, %v81
    %vm85 = vcmp.eq.s32.totalorder %v76, %v81
    %vm86 = vcmp.eq.s32.totalorder %v77, %v81
    %v87 = vsel %vm82, %v44, 0.0
    %v88 = vsel %vm83, %v45, 0.0
    %v89 = vsel %vm84, %v46, 0.0
    %v90 = vsel %vm85, %v47, 0.0
    %v91 = vsel %vm86, %v48, 0.0
    %v92 = vadd.f32 %v87, %v88
    %v93 = vadd.f32 %v92, %v89
    %v94 = vadd.f32 %v93, %v90
    %v95 = vsel %vm32, %v91, 0.0
    %v96 = vadd.f32 %v94, %v95
    %v97 = vrot.slane %v96, 4
    %v98 = vadd.f32 %v96, %v97
    %v99 = vrot.slane %v98, 2
    %v100 = vadd.f32 %v98, %v99
    %v101 = vrot.slane %v100, 1
    %v102 = vadd.f32 %v100, %v101
    %vm103 = vcmp.ge.s32.totalorder %v31, 0
    %v104 = vsub.f32 %v71, %v102
    %v105 = vsel %vm103, %v104, 0.0
    %106 = vst [vmem:[#allocation5] sm:$0x1] %v105
    // Predicated region
    $region14: #{tpu_custom_call.1} parent=1 // pred_check
      _
    $region15: #{tpu_custom_call.1} parent=1 // pred_check_branch
      %108 = sbr.rel (0) target = $region17
    $region16: #{tpu_custom_call.1} parent=1 // pred_region
      %s110 = ssub.s32 16, 16
      %111 = vsyncadd [#allocation4], %s110
      %s113 = sshll.u32 [#allocation5], 4
      %s114 = int_to_ptr.vmem [resolvable:$true] %s113
      %116 = dma.vmem_to_hbm [thread:$0]  %s114, 16, %s2, [#allocation4]
    $region17: #{tpu_custom_call.1} parent=1 // pred_fallthru
      _
    // Predicated region
    $region18: #{tpu_custom_call.1} parent=1 // pred_check
      _
    $region19: #{tpu_custom_call.1} parent=1 // pred_check_branch
      %118 = sbr.rel (0) target = $region21
    $region20: #{tpu_custom_call.1} parent=1 // pred_region
      %119 = dma.done [#allocation4], 16
    $region21: #{tpu_custom_call.1} parent=1 // pred_fallthru
      _
    %120 = vsyncpa [#allocation3], 1
    %121 = vsyncpa [#allocation4], 1

</llo_original>
